<compile_context>
chip_gen: v7x
topology: tpu7x:2x2x1
jax: 0.10.0
libtpu: 0.0.40
codegen_flags: <defaults>
</compile_context>

<pallas_src>
import functools

import jax
import jax.numpy as jnp
from jax import lax
from jax.experimental import pallas as pl
from jax.experimental.pallas import tpu as pltpu

KH, KW = 3, 3      # fixed 3x3 kernel, stride=1, padding=1
LANE = 128         # TPU lane width


def _pick_row_tile(H, W, max_pixels=128):
    """Largest TH dividing H with TH*W pixels <= cap and sublane-friendly."""
    cap = max(max_pixels, W)
    for th in range(H, 0, -1):
        if H % th:
            continue
        if th * W <= cap and ((th * W) % 8 == 0 or th == H):
            return th
    return H


def conv3x3_kernel(x_ref, w_ref, b_ref, o_ref, *, row_tile, width):
    """One (batch, row-tile) grid step.

    x_ref: (1, H+2, W+2, Cin)        bf16 padded image (resident per batch)
    w_ref: (KH*KW*Cin, Cout_pad)     bf16 im2col-ordered weights
    b_ref: (1, Cout_pad)             f32 bias
    o_ref: (1, row_tile*W, Cout_pad) f32 lane-dense output tile
    """
    TH, W = row_tile, width
    Cin = x_ref.shape[-1]

    r = pl.program_id(1)
    row0 = pl.multiple_of(r * TH, TH)
    # (TH+2, W+2, Cin) slab of the padded image for this row tile.
    x = x_ref[:, pl.ds(row0, TH + 2), :, :][0].astype(jnp.float32)

    # im2col ONCE per tile: tap-major, channel-minor -> (TH*W, KH*KW*Cin).
    taps = [x[kh:kh + TH, kw:kw + W, :] for kh in range(KH) for kw in range(KW)]
    patch = jnp.concatenate(taps, axis=-1).reshape(TH * W, KH * KW * Cin)

    # Single fused MXU matmul: bf16 operands, f32 accumulate.
    acc = jnp.dot(patch.astype(jnp.bfloat16), w_ref[...],
                  preferred_element_type=jnp.float32)
    acc = acc + b_ref[...]                      # bias broadcast over pixels
    o_ref[0] = acc.astype(o_ref.dtype)          # full 128-lane store


def conv_block3_forward(x_nchw, weight_oihw, bias, *, row_tile=None):
    """Replicates nn.Conv2d(Cin, Cout, 3, stride=1, padding=1, bias=True).

    x_nchw:      (N, Cin, H, W) float32
    weight_oihw: (Cout, Cin, 3, 3)
    bias:        (Cout,)
    returns:     (N, Cout, H, W) float32
    """
    N, Cin, H, W = x_nchw.shape
    Cout = weight_oihw.shape[0]

    TH = row_tile if row_tile is not None else _pick_row_tile(H, W)
    assert H % TH == 0
    R = H // TH
    Cout_pad = pl.cdiv(Cout, LANE) * LANE       # lane-dense output channels

    # Layout plumbing: NCHW -> NHWC, +1 spatial halo, bf16 cast.
    x_nhwc = jnp.transpose(x_nchw, (0, 2, 3, 1))
    x_pad = jnp.pad(x_nhwc, ((0, 0), (1, 1), (1, 1), (0, 0))).astype(jnp.bfloat16)

    # Weights -> (KH*KW*Cin, Cout_pad), im2col (tap-major, channel-minor) order.
    w_mat = jnp.transpose(weight_oihw, (2, 3, 1, 0)).reshape(KH * KW * Cin, Cout)
    w_mat = jnp.pad(w_mat, ((0, 0), (0, Cout_pad - Cout))).astype(jnp.bfloat16)
    b_mat = jnp.pad(bias.astype(jnp.float32),
                    (0, Cout_pad - Cout)).reshape(1, Cout_pad)

    kernel = functools.partial(conv3x3_kernel, row_tile=TH, width=W)

    out = pl.pallas_call(
        kernel,
        out_shape=jax.ShapeDtypeStruct((N, H * W, Cout_pad), jnp.float32),
        grid=(N, R),
        in_specs=[
            # Block index constant along r -> padded image DMA'd once per batch.
            pl.BlockSpec((1, H + 2, W + 2, Cin), lambda n, r: (n, 0, 0, 0)),
            pl.BlockSpec((KH * KW * Cin, Cout_pad), lambda n, r: (0, 0)),
            pl.BlockSpec((1, Cout_pad), lambda n, r: (0, 0)),
        ],
        out_specs=pl.BlockSpec((1, TH * W, Cout_pad), lambda n, r: (n, r, 0)),
        compiler_params=pltpu.CompilerParams(
            dimension_semantics=("parallel", "parallel"),
            vmem_limit_bytes=64 * 1024 * 1024),
    )(x_pad, w_mat, b_mat)

    # Un-pad lanes, restore NCHW to match the PyTorch module output.
    out = out[:, :, :Cout].reshape(N, H, W, Cout)
    return jnp.transpose(out, (0, 3, 1, 2))


def _reference_conv(x_nchw, weight_oihw, bias):
    out = lax.conv_general_dilated(
        x_nchw, weight_oihw,
        window_strides=(1, 1), padding=((1, 1), (1, 1)),
        dimension_numbers=("NCHW", "OIHW", "NCHW"))
    return out + bias.reshape(1, -1, 1, 1)


if __name__ == "__main__":
    key = jax.random.PRNGKey(0)
    k_x, k_w, k_b = jax.random.split(key, 3)

    N, Cin, H, W = 2, 4, 16, 16
    Cout = 8

    x = jax.random.normal(k_x, (N, Cin, H, W), dtype=jnp.float32)

    # Deterministic Conv2d-style init (kaiming-uniform-ish bound).
    fan_in = Cin * KH * KW
    bound = 1.0 / (fan_in ** 0.5)
    weight = jax.random.uniform(k_w, (Cout, Cin, KH, KW),
                                minval=-bound, maxval=bound, dtype=jnp.float32)
    bias = jax.random.uniform(k_b, (Cout,), minval=-bound, maxval=bound,
                              dtype=jnp.float32)

    out = jax.block_until_ready(conv_block3_forward(x, weight, bias))
    assert out.shape == (N, Cout, H, W)

    # Tight check: same bf16-quantized operands, f32 math (isolates kernel math).
    xq = x.astype(jnp.bfloat16).astype(jnp.float32)
    wq = weight.astype(jnp.bfloat16).astype(jnp.float32)
    ref_q = jax.block_until_ready(_reference_conv(xq, wq, bias))
    assert jnp.allclose(out, ref_q, atol=2e-3, rtol=2e-3)

    # Spec-level check vs the full-f32 conv (bf16 quantization noise only).
    ref = jax.block_until_ready(_reference_conv(x, weight, bias))
    assert jnp.allclose(out, ref, atol=5e-2, rtol=5e-2)

    print("KERNEL_OK")
</pallas_src>

<mosaic_0001>
module attributes {stable_mosaic.version = 11 : i64} {
  func.func @conv3x3_kernel(%arg0: i32, %arg1: i32, %arg2: memref<1x18x18x4xbf16, #tpu.memory_space<vmem>>, %arg3: memref<36x128xbf16, #tpu.memory_space<vmem>>, %arg4: memref<1x128xf32, #tpu.memory_space<vmem>>, %arg5: memref<1x128x128xf32, #tpu.memory_space<vmem>>) attributes {dimension_semantics = [#tpu.dimension_semantics<parallel>, #tpu.dimension_semantics<parallel>], iteration_bounds = array<i64: 2, 2>, scalar_prefetch = 0 : i64, scratch_operands = 0 : i64, tpu.core_type = #tpu.core_type<tc>, window_params = [{transform_indices = @transform_0, window_bounds = array<i64: 1, 18, 18, 4>}, {pipeline_mode = #tpu.pipeline_mode<synchronous>, transform_indices = @transform_1, window_bounds = array<i64: 36, 128>}, {pipeline_mode = #tpu.pipeline_mode<synchronous>, transform_indices = @transform_2, window_bounds = array<i64: 1, 128>}, {transform_indices = @transform_3, window_bounds = array<i64: 1, 128, 128>}]} {
    %c8_i32 = arith.constant 8 : i32
    %0 = arith.muli %arg1, %c8_i32 : i32
    %1 = tpu.assume_multiple %0, 8 : i32
    %c0 = arith.constant 0 : index
    %2 = arith.index_cast %1 : i32 to index
    %c0_0 = arith.constant 0 : index
    %c0_1 = arith.constant 0 : index
    %3 = vector.load %arg2[%c0, %2, %c0_0, %c0_1] : memref<1x18x18x4xbf16, #tpu.memory_space<vmem>>, vector<1x10x18x4xbf16>
    %4 = vector.shape_cast %3 : vector<1x10x18x4xbf16> to vector<10x18x4xbf16>
    %5 = arith.extf %4 : vector<10x18x4xbf16> to vector<10x18x4xf32>
    %6 = vector.extract_strided_slice %5 {offsets = [0, 0, 0], sizes = [8, 16, 4], strides = [1, 1, 1]} : vector<10x18x4xf32> to vector<8x16x4xf32>
    %7 = vector.extract_strided_slice %5 {offsets = [0, 1, 0], sizes = [8, 16, 4], strides = [1, 1, 1]} : vector<10x18x4xf32> to vector<8x16x4xf32>
    %8 = vector.extract_strided_slice %5 {offsets = [0, 2, 0], sizes = [8, 16, 4], strides = [1, 1, 1]} : vector<10x18x4xf32> to vector<8x16x4xf32>
    %9 = vector.extract_strided_slice %5 {offsets = [1, 0, 0], sizes = [8, 16, 4], strides = [1, 1, 1]} : vector<10x18x4xf32> to vector<8x16x4xf32>
    %10 = vector.extract_strided_slice %5 {offsets = [1, 1, 0], sizes = [8, 16, 4], strides = [1, 1, 1]} : vector<10x18x4xf32> to vector<8x16x4xf32>
    %11 = vector.extract_strided_slice %5 {offsets = [1, 2, 0], sizes = [8, 16, 4], strides = [1, 1, 1]} : vector<10x18x4xf32> to vector<8x16x4xf32>
    %12 = vector.extract_strided_slice %5 {offsets = [2, 0, 0], sizes = [8, 16, 4], strides = [1, 1, 1]} : vector<10x18x4xf32> to vector<8x16x4xf32>
    %13 = vector.extract_strided_slice %5 {offsets = [2, 1, 0], sizes = [8, 16, 4], strides = [1, 1, 1]} : vector<10x18x4xf32> to vector<8x16x4xf32>
    %14 = vector.extract_strided_slice %5 {offsets = [2, 2, 0], sizes = [8, 16, 4], strides = [1, 1, 1]} : vector<10x18x4xf32> to vector<8x16x4xf32>
    %15 = tpu.concatenate %6, %7, %8, %9, %10, %11, %12, %13, %14 in 2 : vector<8x16x4xf32>, vector<8x16x4xf32>, vector<8x16x4xf32>, vector<8x16x4xf32>, vector<8x16x4xf32>, vector<8x16x4xf32>, vector<8x16x4xf32>, vector<8x16x4xf32>, vector<8x16x4xf32> -> vector<8x16x36xf32>
    %16 = vector.shape_cast %15 : vector<8x16x36xf32> to vector<128x36xf32>
    %17 = arith.truncf %16 : vector<128x36xf32> to vector<128x36xbf16>
    %c0_2 = arith.constant 0 : index
    %c0_3 = arith.constant 0 : index
    %18 = vector.load %arg3[%c0_2, %c0_3] : memref<36x128xbf16, #tpu.memory_space<vmem>>, vector<36x128xbf16>
    %cst = arith.constant dense<0.000000e+00> : vector<128x128xf32>
    %19 = tpu.matmul %17, %18, %cst {dimension_numbers = #tpu.dot_dimension_numbers<[1], [0], [0], [1], [0, 0, 1, 1], [], []>} : vector<128x36xbf16>, vector<36x128xbf16>, vector<128x128xf32> -> vector<128x128xf32>
    %c0_4 = arith.constant 0 : index
    %c0_5 = arith.constant 0 : index
    %20 = vector.load %arg4[%c0_4, %c0_5] : memref<1x128xf32, #tpu.memory_space<vmem>>, vector<1x128xf32>
    %21 = vector.broadcast %20 : vector<1x128xf32> to vector<128x128xf32>
    %22 = arith.addf %19, %21 : vector<128x128xf32>
    %c0_6 = arith.constant 0 : index
    %c0_7 = arith.constant 0 : index
    %c0_8 = arith.constant 0 : index
    %23 = vector.load %arg5[%c0_6, %c0_7, %c0_8] : memref<1x128x128xf32, #tpu.memory_space<vmem>>, vector<1x128x128xf32>
    %24 = vector.shape_cast %23 : vector<1x128x128xf32> to vector<128x128xf32>
    %25 = vector.shape_cast %22 : vector<128x128xf32> to vector<1x128x128xf32>
    tpu.vector_store %arg5[%c0_6, %c0_7, %c0_8], %25 {strides = array<i32>} : memref<1x128x128xf32, #tpu.memory_space<vmem>>, vector<1x128x128xf32>,
    return
  }
  func.func @transform_0(%arg0: i32, %arg1: i32) -> (i32, i32, i32, i32) {
    %c0_i32 = arith.constant 0 : i32
    %c0_i32_0 = arith.constant 0 : i32
    %c0_i32_1 = arith.constant 0 : i32
    %c0_i32_2 = arith.constant 0 : i32
    return %arg0, %c0_i32, %c0_i32_0, %c0_i32_1 : i32, i32, i32, i32
  }
  func.func @transform_1(%arg0: i32, %arg1: i32) -> (i32, i32) {
    %c0_i32 = arith.constant 0 : i32
    %c0_i32_0 = arith.constant 0 : i32
    %c0_i32_1 = arith.constant 0 : i32
    return %c0_i32, %c0_i32_0 : i32, i32
  }
  func.func @transform_2(%arg0: i32, %arg1: i32) -> (i32, i32) {
    %c0_i32 = arith.constant 0 : i32
    %c0_i32_0 = arith.constant 0 : i32
    %c0_i32_1 = arith.constant 0 : i32
    return %c0_i32, %c0_i32_0 : i32, i32
  }
  func.func @transform_3(%arg0: i32, %arg1: i32) -> (i32, i32, i32) {
    %c0_i32 = arith.constant 0 : i32
    %c0_i32_0 = arith.constant 0 : i32
    return %arg0, %arg1, %c0_i32 : i32, i32, i32
  }
}

</mosaic_0001>

<llo_original>
// kernel: tpu_custom_call.1
$region0: #{tpu_custom_call.1}
  #allocation0 [shape = 'u32[]', space=smem, size = 0x4, offset = 0x4, fixed_abs, tag = 'smem constant byte address 0x4 - core index']
  #allocation1 [shape = 'u32[144,128]{1,0:T(1,128)}', space=vmem, size = 0x12000, scoped, tag = 'internal scratch']
  %s0 = inlined_call_operand.hbm [shape: bf16[2,18,18,4], index: 0, kind: input, shape index: {}]
  %s1 = inlined_call_operand.hbm [shape: bf16[36,128], index: 1, kind: input, shape index: {}]
  %s2 = inlined_call_operand.hbm [shape: f32[1,128], index: 2, kind: input, shape index: {}]
  %s3 = inlined_call_operand.hbm [shape: f32[2,256,128], index: 3, kind: output, shape index: {}]
  %s4 = sld [smem:[#allocation0]]
  $region57: #{tpu_custom_call.1} parent=0
    _
  %s6 = ssub.s32 1, %s4
  %s7 = scalar_select 0, %s6, %s4
  $region1: #{tpu_custom_call.1} parent=0
    #allocation2 [shape = 'u8[221184]{0}', space=vmem, size = 0x36000, scoped, tag = 'input window, operand 0']
    #allocation3 [shape = 's32[2]{0}', space=sflag, size = 0x8, scoped, tag = 'scoped memory for tpu_custom_call.1']
    #allocation4 [shape = 's32[2]{0}', space=sflag, size = 0x8, scoped, tag = 'scoped memory for tpu_custom_call.1']
    #allocation5 [shape = 'u8[10240]{0}', space=vmem, size = 0x2800, scoped, tag = 'input window, operand 1, single buffered']
    #allocation6 [shape = 's32[1]{0}', space=sflag, size = 0x4, scoped, tag = 'scoped memory for tpu_custom_call.1']
    #allocation7 [shape = 'u8[512]{0}', space=vmem, size = 0x400, scoped, tag = 'input window, operand 2, single buffered']
    #allocation8 [shape = 'u8[131072]{0}', space=vmem, size = 0x20000, scoped, tag = 'output window, operand 0']
    %8 = vsyncpa [#allocation3], 0
    %s9 = scalar_lea.sflag [#allocation3], 1
    %10 = vsyncpa %s9, 0
    %11 = vsyncpa [#allocation6], 0
    %12 = vsyncpa [#allocation4], 0
    %s13 = scalar_lea.sflag [#allocation4], 1
    %14 = vsyncpa %s13, 0
    loop: start=0, step=1, limit=6
    $region2: #{tpu_custom_call.1} parent=1 // loop_pre_header
      _
    $region3: #{tpu_custom_call.1} parent=1 // loop_header
      %s16 = sphi 0, %s20
      %p17 = scmp.ge.s32.totalorder %s16, 6
      %s23 = sphi 0, %s35
      %s24 = sphi 0, %s31
      %s25 = sphi 0, %s23
      %s26 = sphi 0, %s24
      %s27 = sphi 0, %s25
      %s28 = sphi 0, %s26
      %s38 = sphi 0, %s40
      %s41 = sphi 0, %s38
      %s42 = sphi 0, %s41
      %s58 = sphi 0, %s42
      %s62 = sphi 0, %s62
      %s64 = sphi 0, %s62
      %s65 = sphi 0, %s64
      %s79 = sphi 0, %s65
      %s83 = sphi 0, %s83
      %s85 = sphi 0, %s83
      %s86 = sphi 0, %s85
      %s100 = sphi 0, %s86
      %s108 = sphi 0, %s110
      %s111 = sphi 0, %s108
      %s112 = sphi 0, %s111
      %s128 = sphi 0, %s112
    $region4: #{tpu_custom_call.1} parent=1 // loop_header_branch
      %19 = sbr.rel (%p17) target = $region8
    $region5: #{tpu_custom_call.1} parent=1 // loop_body
      %s21 = ssub.s32 %s16, 1
      %s22 = ssub.s32 %s16, 2
      %s29 = sadd.s32 1, %s24
      %p30 = scmp.ge.s32.totalorder %s29, 2
      %s31 = scalar_select %p30, 0, %s29
      %s32 = sadd.s32 1, %s23
      %s33 = scalar_select %p30, %s32, %s23
      %p34 = scmp.ge.s32.totalorder %s33, 2
      %s35 = scalar_select %p34, 0, %s33
      %s36 = ssub.s32 %s23, %s35
      %p37 = scmp.eq.s32.totalorder %s36, 0
      %s39 = sadd.s32 %s38, 1
      %s40 = scalar_select %p37, %s38, %s39
      %p43 = pneg %p37
      %p44 = scmp.eq.s32.totalorder %s16, 3
      %p45 = por %p43, %p44
      %p46 = scmp.ne.s32.totalorder %s38, %s41
      %p47 = scmp.eq.s32.totalorder %s16, 0
      %p48 = por %p46, %p47
      %p49 = scmp.ne.s32.totalorder %s38, %s41
      %p50 = scmp.eq.s32.totalorder %s21, 3
      %p51 = por %p49, %p50
      %p52 = scmp.ne.s32.totalorder %s41, %s42
      %p53 = scmp.eq.s32.totalorder %s21, 0
      %p54 = por %p52, %p53
      %p55 = scmp.ne.s32.totalorder %s41, %s42
      %p56 = scmp.eq.s32.totalorder %s22, 3
      %p57 = por %p55, %p56
      %p59 = scmp.ne.s32.totalorder %s42, %s58
      %p60 = scmp.eq.s32.totalorder %s22, 0
      %p61 = por %p59, %p60
      %s63 = sadd.s32 %s62, 1
      %p66 = scmp.eq.s32.totalorder %s16, 3
      %p67 = scmp.ne.s32.totalorder %s62, %s64
      %p68 = scmp.eq.s32.totalorder %s16, 0
      %p69 = por %p67, %p68
      %p70 = scmp.ne.s32.totalorder %s62, %s64
      %p71 = scmp.eq.s32.totalorder %s21, 3
      %p72 = por %p70, %p71
      %p73 = scmp.ne.s32.totalorder %s64, %s65
      %p74 = scmp.eq.s32.totalorder %s21, 0
      %p75 = por %p73, %p74
      %p76 = scmp.ne.s32.totalorder %s64, %s65
      %p77 = scmp.eq.s32.totalorder %s22, 3
      %p78 = por %p76, %p77
      %p80 = scmp.ne.s32.totalorder %s65, %s79
      %p81 = scmp.eq.s32.totalorder %s22, 0
      %p82 = por %p80, %p81
      %s84 = sadd.s32 %s83, 1
      %p87 = scmp.eq.s32.totalorder %s16, 3
      %p88 = scmp.ne.s32.totalorder %s83, %s85
      %p89 = scmp.eq.s32.totalorder %s16, 0
      %p90 = por %p88, %p89
      %p91 = scmp.ne.s32.totalorder %s83, %s85
      %p92 = scmp.eq.s32.totalorder %s21, 3
      %p93 = por %p91, %p92
      %p94 = scmp.ne.s32.totalorder %s85, %s86
      %p95 = scmp.eq.s32.totalorder %s21, 0
      %p96 = por %p94, %p95
      %p97 = scmp.ne.s32.totalorder %s85, %s86
      %p98 = scmp.eq.s32.totalorder %s22, 3
      %p99 = por %p97, %p98
      %p101 = scmp.ne.s32.totalorder %s86, %s100
      %p102 = scmp.eq.s32.totalorder %s22, 0
      %p103 = por %p101, %p102
      %s104 = ssub.s32 %s23, %s35
      %s105 = ssub.s32 %s24, %s31
      %s106 = sor.u32 %s104, %s105
      %p107 = scmp.eq.s32.totalorder %s106, 0
      %s109 = sadd.s32 %s108, 1
      %s110 = scalar_select %p107, %s108, %s109
      %p113 = pneg %p107
      %p114 = scmp.eq.s32.totalorder %s16, 3
      %p115 = por %p113, %p114
      %p116 = scmp.ne.s32.totalorder %s108, %s111
      %p117 = scmp.eq.s32.totalorder %s16, 0
      %p118 = por %p116, %p117
      %p119 = scmp.ne.s32.totalorder %s108, %s111
      %p120 = scmp.eq.s32.totalorder %s21, 3
      %p121 = por %p119, %p120
      %p122 = scmp.ne.s32.totalorder %s111, %s112
      %p123 = scmp.eq.s32.totalorder %s21, 0
      %p124 = por %p122, %p123
      %p125 = scmp.ne.s32.totalorder %s111, %s112
      %p126 = scmp.eq.s32.totalorder %s22, 3
      %p127 = por %p125, %p126
      %p129 = scmp.ne.s32.totalorder %s112, %s128
      %p130 = scmp.eq.s32.totalorder %s22, 0
      %p131 = por %p129, %p130
      %p132 = scmp.le.s32.totalorder 1, %s16
      %p133 = scmp.lt.s32.totalorder %s16, 5
      %p134 = pnand %p132, %p133
      %p135 = pneg %p134
      // Predicated region
      $region9: #{tpu_custom_call.1} parent=5 // pred_check
        _
      $region10: #{tpu_custom_call.1} parent=5 // pred_check_branch
        %137 = sbr.rel (%p134) target = $region12
      $region11: #{tpu_custom_call.1} parent=5 // pred_region
        %s138 = ssub.s32 %s16, 1
        // Predicated region
        $region13: #{tpu_custom_call.1} parent=11 // pred_check
          %p139 = pneg %p75
        $region14: #{tpu_custom_call.1} parent=11 // pred_check_branch
          %141 = sbr.rel (%p139) target = $region16
        $region15: #{tpu_custom_call.1} parent=11 // pred_region
          %s143 = ssub.s32 320, 320
          %144 = vsyncadd [#allocation6], %s143
          %s145 = sshll.u32 [#allocation5], 4
          %s146 = int_to_ptr.vmem [resolvable:$true] %s145
          %151 = dma.hbm_to_vmem [thread:$0]  %s1, 320, %s146, [#allocation6], 64, 64, 4
        $region16: #{tpu_custom_call.1} parent=11 // pred_fallthru
          _
        // Predicated region
        $region17: #{tpu_custom_call.1} parent=11 // pred_check
          %p152 = pneg %p96
        $region18: #{tpu_custom_call.1} parent=11 // pred_check_branch
          %154 = sbr.rel (%p152) target = $region20
        $region19: #{tpu_custom_call.1} parent=11 // pred_region
          %s156 = ssub.s32 16, 16
          %157 = vsyncadd [#allocation6], %s156
          %s159 = sshll.u32 [#allocation7], 4
          %s160 = int_to_ptr.vmem [resolvable:$true] %s159
          %162 = dma.hbm_to_vmem [thread:$0]  %s2, 16, %s160, [#allocation6]
        $region20: #{tpu_custom_call.1} parent=11 // pred_fallthru
          _
      $region12: #{tpu_custom_call.1} parent=5 // pred_fallthru
        _
      %p163 = scmp.lt.s32.totalorder %s16, 4
      // Predicated region
      $region21: #{tpu_custom_call.1} parent=5 // pred_check
        %p164 = pneg %p163
      $region22: #{tpu_custom_call.1} parent=5 // pred_check_branch
        %166 = sbr.rel (%p164) target = $region24
      $region23: #{tpu_custom_call.1} parent=5 // pred_region
        // Predicated region
        $region25: #{tpu_custom_call.1} parent=23 // pred_check
          %p167 = pneg %p48
        $region26: #{tpu_custom_call.1} parent=23 // pred_check_branch
          %169 = sbr.rel (%p167) target = $region28
        $region27: #{tpu_custom_call.1} parent=23 // pred_region
          %s170 = sand.u32 %s38, 1
          %s171 = scalar_lea.sflag [#allocation3], %s170
          %s172 = sand.u32 %s38, 1
          %s173 = smul.addr %s172, 216
          %s174 = scalar_lea.vmem [#allocation2], %s173
          %s176 = ssub.s32 3456, 3456
          %177 = vsyncadd %s171, %s176
          %s178 = smul.addr %s23, 54
          %s179 = smul.addr %s178, 64
          %s180 = scalar_lea.hbm %s0, %s179
          %s181 = sshll.u32 %s174, 4
          %s182 = int_to_ptr.vmem [resolvable:$true] %s181
          %187 = dma.hbm_to_vmem [thread:$0]  %s180, 3456, %s182, %s171, 64, 64, 4
        $region28: #{tpu_custom_call.1} parent=23 // pred_fallthru
          _
      $region24: #{tpu_custom_call.1} parent=5 // pred_fallthru
        _
      %p188 = scmp.le.s32.totalorder 1, %s16
      %p189 = scmp.lt.s32.totalorder %s16, 5
      %p190 = pnand %p188, %p189
      %p191 = pneg %p190
      // Predicated region
      $region29: #{tpu_custom_call.1} parent=5 // pred_check
        _
      $region30: #{tpu_custom_call.1} parent=5 // pred_check_branch
        %193 = sbr.rel (%p190) target = $region32
      $region31: #{tpu_custom_call.1} parent=5 // pred_region
        %s194 = ssub.s32 %s16, 1
        %s195 = sand.u32 %s41, 1
        %s196 = scalar_lea.sflag [#allocation3], %s195
        %s197 = sand.u32 %s41, 1
        %s198 = smul.addr %s197, 216
        %s199 = scalar_lea.vmem [#allocation2], %s198
        // Predicated region
        $region33: #{tpu_custom_call.1} parent=31 // pred_check
          %p200 = pneg %p54
        $region34: #{tpu_custom_call.1} parent=31 // pred_check_branch
          %202 = sbr.rel (%p200) target = $region36
        $region35: #{tpu_custom_call.1} parent=31 // pred_region
          %203 = dma.done %s196, 3456
        $region36: #{tpu_custom_call.1} parent=31 // pred_fallthru
          _
        // Predicated region
        $region37: #{tpu_custom_call.1} parent=31 // pred_check
          %p204 = pneg %p75
        $region38: #{tpu_custom_call.1} parent=31 // pred_check_branch
          %206 = sbr.rel (%p204) target = $region40
        $region39: #{tpu_custom_call.1} parent=31 // pred_region
          %207 = dma.done [#allocation6], 320
        $region40: #{tpu_custom_call.1} parent=31 // pred_fallthru
          _
        // Predicated region
        $region41: #{tpu_custom_call.1} parent=31 // pred_check
          %p208 = pneg %p96
        $region42: #{tpu_custom_call.1} parent=31 // pred_check_branch
          %210 = sbr.rel (%p208) target = $region44
        $region43: #{tpu_custom_call.1} parent=31 // pred_region
          %211 = dma.done [#allocation6], 16
        $region44: #{tpu_custom_call.1} parent=31 // pred_fallthru
          _
        %s212 = sand.u32 %s41, 1
        %s213 = scalar_lea.sflag [#allocation3], %s212
        %s214 = sand.u32 %s41, 1
        %s215 = smul.addr %s214, 216
        %s216 = scalar_lea.vmem [#allocation2], %s215
        %p217 = pneg %p54
        %p218 = pneg %p51
        %p219 = pneg %p75
        %p220 = pneg %p72
        %p221 = pneg %p96
        %p222 = pneg %p93
        %p223 = pneg %p124
        %p224 = pneg %p121
        %s225 = sand.u32 %s111, 1
        %s226 = scalar_lea.sflag [#allocation4], %s225
        %s227 = sand.u32 %s111, 1
        %s228 = smul.addr %s227, 128
        %s229 = scalar_lea.vmem [#allocation8], %s228
        %s230 = smul.u32 16, %s26
        %s232 = smul.u32 %s26, 8
        %s233 = smul.u32 %s232, 3
        %s234 = smul.addr %s233, 4
        %s235 = scalar_lea.vmem %s199, %s234 [#allocation2]
        %v236 = vld [vmem:[%s235] sm:$0xf]
        %v237 = vld [vmem:[%s235 + $0x4] sm:$0xf]
        %v238 = vld [vmem:[%s235 + $0x8] sm:$0x1]
        %v239 = vld [vmem:[%s235 + $0xc] sm:$0xf]
        %v240 = vld [vmem:[%s235 + $0x10] sm:$0xf]
        %v241 = vld [vmem:[%s235 + $0x14] sm:$0x1]
        %v242 = vld [vmem:[%s235 + $0x18] sm:$0xf]
        %v243 = vld [vmem:[%s235 + $0x1c] sm:$0xf]
        %v244 = vld [vmem:[%s235 + $0x20] sm:$0x1]
        %v245 = vld [vmem:[%s235 + $0x24] sm:$0xf]
        %v246 = vld [vmem:[%s235 + $0x28] sm:$0xf]
        %v247 = vld [vmem:[%s235 + $0x2c] sm:$0x1]
        %v248 = vld [vmem:[%s235 + $0x30] sm:$0xf]
        %v249 = vld [vmem:[%s235 + $0x34] sm:$0xf]
        %v250 = vld [vmem:[%s235 + $0x38] sm:$0x1]
        %v251 = vld [vmem:[%s235 + $0x3c] sm:$0xf]
        %v252 = vld [vmem:[%s235 + $0x40] sm:$0xf]
        %v253 = vld [vmem:[%s235 + $0x44] sm:$0x1]
        %v254 = vld [vmem:[%s235 + $0x48] sm:$0xf]
        %v255 = vld [vmem:[%s235 + $0x4c] sm:$0xf]
        %v256 = vld [vmem:[%s235 + $0x50] sm:$0x1]
        %v257 = vld [vmem:[%s235 + $0x54] sm:$0xf]
        %v258 = vld [vmem:[%s235 + $0x58] sm:$0xf]
        %v259 = vld [vmem:[%s235 + $0x5c] sm:$0x1]
        %v260 = vld [vmem:[%s235 + $0x60] sm:$0xf]
        %v261 = vld [vmem:[%s235 + $0x64] sm:$0xf]
        %v262 = vld [vmem:[%s235 + $0x68] sm:$0x1]
        %v263 = vld [vmem:[%s235 + $0x6c] sm:$0xf]
        %v264 = vld [vmem:[%s235 + $0x70] sm:$0xf]
        %v265 = vld [vmem:[%s235 + $0x74] sm:$0x1]
        %v266 = vunpack.c.l.bf16 %v236
        %v267 = vunpack.c.l.bf16 %v237
        %v268 = vunpack.c.l.bf16 %v238
        %v269 = vunpack.c.l.bf16 %v239
        %v270 = vunpack.c.l.bf16 %v240
        %v271 = vunpack.c.l.bf16 %v241
        %v272 = vunpack.c.l.bf16 %v242
        %v273 = vunpack.c.l.bf16 %v243
        %v274 = vunpack.c.l.bf16 %v244
        %v275 = vunpack.c.l.bf16 %v245
        %v276 = vunpack.c.l.bf16 %v246
        %v277 = vunpack.c.l.bf16 %v247
        %v278 = vunpack.c.l.bf16 %v248
        %v279 = vunpack.c.l.bf16 %v249
        %v280 = vunpack.c.l.bf16 %v250
        %v281 = vunpack.c.l.bf16 %v251
        %v282 = vunpack.c.l.bf16 %v252
        %v283 = vunpack.c.l.bf16 %v253
        %v284 = vunpack.c.l.bf16 %v254
        %v285 = vunpack.c.l.bf16 %v255
        %v286 = vunpack.c.l.bf16 %v256
        %v287 = vunpack.c.l.bf16 %v257
        %v288 = vunpack.c.l.bf16 %v258
        %v289 = vunpack.c.l.bf16 %v259
        %v290 = vunpack.c.l.bf16 %v260
        %v291 = vunpack.c.l.bf16 %v261
        %v292 = vunpack.c.l.bf16 %v262
        %v293 = vunpack.c.l.bf16 %v263
        %v294 = vunpack.c.l.bf16 %v264
        %v295 = vunpack.c.l.bf16 %v265
        %vm320 = vcmask 1046528
        %v321 = vrot.slane %v266, 1
        %v322 = vrot.slane %v267, 1
        %v323 = vsel %vm320, %v321, %v322
        %v324 = vrot.slane %v268, 1
        %v325 = vsel %vm320, %v322, %v324
        %v326 = vrot.slane %v269, 1
        %v327 = vrot.slane %v270, 1
        %v328 = vsel %vm320, %v326, %v327
        %v329 = vrot.slane %v271, 1
        %v330 = vsel %vm320, %v327, %v329
        %v331 = vrot.slane %v272, 1
        %v332 = vrot.slane %v273, 1
        %v333 = vsel %vm320, %v331, %v332
        %v334 = vrot.slane %v274, 1
        %v335 = vsel %vm320, %v332, %v334
        %v336 = vrot.slane %v275, 1
        %v337 = vrot.slane %v276, 1
        %v338 = vsel %vm320, %v336, %v337
        %v339 = vrot.slane %v277, 1
        %v340 = vsel %vm320, %v337, %v339
        %v341 = vrot.slane %v278, 1
        %v342 = vrot.slane %v279, 1
        %v343 = vsel %vm320, %v341, %v342
        %v344 = vrot.slane %v280, 1
        %v345 = vsel %vm320, %v342, %v344
        %v346 = vrot.slane %v281, 1
        %v347 = vrot.slane %v282, 1
        %v348 = vsel %vm320, %v346, %v347
        %v349 = vrot.slane %v283, 1
        %v350 = vsel %vm320, %v347, %v349
        %v351 = vrot.slane %v284, 1
        %v352 = vrot.slane %v285, 1
        %v353 = vsel %vm320, %v351, %v352
        %v354 = vrot.slane %v286, 1
        %v355 = vsel %vm320, %v352, %v354
        %v356 = vrot.slane %v287, 1
        %v357 = vrot.slane %v288, 1
        %v358 = vsel %vm320, %v356, %v357
        %v359 = vrot.slane %v289, 1
        %v360 = vsel %vm320, %v357, %v359
        %361 = vrot.lane.b32.xlu0 %v323, 4
        %v362 = vpop.permute.xlu0 %361
        %363 = vrot.lane.b32.xlu0 %v325, 4
        %v364 = vpop.permute.xlu0 %363
        %365 = vrot.lane.b32.xlu0 %v328, 4
        %v366 = vpop.permute.xlu0 %365
        %367 = vrot.lane.b32.xlu0 %v330, 4
        %v368 = vpop.permute.xlu0 %367
        %369 = vrot.lane.b32.xlu0 %v333, 4
        %v370 = vpop.permute.xlu0 %369
        %371 = vrot.lane.b32.xlu0 %v335, 4
        %v372 = vpop.permute.xlu0 %371
        %373 = vrot.lane.b32.xlu0 %v338, 4
        %v374 = vpop.permute.xlu0 %373
        %375 = vrot.lane.b32.xlu0 %v340, 4
        %v376 = vpop.permute.xlu0 %375
        %377 = vrot.lane.b32.xlu0 %v343, 4
        %v378 = vpop.permute.xlu0 %377
        %379 = vrot.lane.b32.xlu0 %v345, 4
        %v380 = vpop.permute.xlu0 %379
        %381 = vrot.lane.b32.xlu0 %v348, 4
        %v382 = vpop.permute.xlu0 %381
        %383 = vrot.lane.b32.xlu0 %v350, 4
        %v384 = vpop.permute.xlu0 %383
        %385 = vrot.lane.b32.xlu0 %v353, 4
        %v386 = vpop.permute.xlu0 %385
        %387 = vrot.lane.b32.xlu0 %v355, 4
        %v388 = vpop.permute.xlu0 %387
        %389 = vrot.lane.b32.xlu0 %v358, 4
        %v390 = vpop.permute.xlu0 %389
        %391 = vrot.lane.b32.xlu0 %v360, 4
        %v392 = vpop.permute.xlu0 %391
        %vm409 = vcmask 1045504
        %v410 = vrot.slane %v266, 2
        %v411 = vrot.slane %v267, 2
        %v412 = vsel %vm409, %v410, %v411
        %v413 = vrot.slane %v268, 2
        %v414 = vsel %vm409, %v411, %v413
        %v415 = vrot.slane %v269, 2
        %v416 = vrot.slane %v270, 2
        %v417 = vsel %vm409, %v415, %v416
        %v418 = vrot.slane %v271, 2
        %v419 = vsel %vm409, %v416, %v418
        %v420 = vrot.slane %v272, 2
        %v421 = vrot.slane %v273, 2
        %v422 = vsel %vm409, %v420, %v421
        %v423 = vrot.slane %v274, 2
        %v424 = vsel %vm409, %v421, %v423
        %v425 = vrot.slane %v275, 2
        %v426 = vrot.slane %v276, 2
        %v427 = vsel %vm409, %v425, %v426
        %v428 = vrot.slane %v277, 2
        %v429 = vsel %vm409, %v426, %v428
        %v430 = vrot.slane %v278, 2
        %v431 = vrot.slane %v279, 2
        %v432 = vsel %vm409, %v430, %v431
        %v433 = vrot.slane %v280, 2
        %v434 = vsel %vm409, %v431, %v433
        %v435 = vrot.slane %v281, 2
        %v436 = vrot.slane %v282, 2
        %v437 = vsel %vm409, %v435, %v436
        %v438 = vrot.slane %v283, 2
        %v439 = vsel %vm409, %v436, %v438
        %v440 = vrot.slane %v284, 2
        %v441 = vrot.slane %v285, 2
        %v442 = vsel %vm409, %v440, %v441
        %v443 = vrot.slane %v286, 2
        %v444 = vsel %vm409, %v441, %v443
        %v445 = vrot.slane %v287, 2
        %v446 = vrot.slane %v288, 2
        %v447 = vsel %vm409, %v445, %v446
        %v448 = vrot.slane %v289, 2
        %v449 = vsel %vm409, %v446, %v448
        %450 = vrot.lane.b32.xlu0 %v412, 8
        %v451 = vpop.permute.xlu0 %450
        %452 = vrot.lane.b32.xlu0 %v414, 8
        %v453 = vpop.permute.xlu0 %452
        %454 = vrot.lane.b32.xlu0 %v417, 8
        %v455 = vpop.permute.xlu0 %454
        %456 = vrot.lane.b32.xlu0 %v419, 8
        %v457 = vpop.permute.xlu0 %456
        %458 = vrot.lane.b32.xlu0 %v422, 8
        %v459 = vpop.permute.xlu0 %458
        %460 = vrot.lane.b32.xlu0 %v424, 8
        %v461 = vpop.permute.xlu0 %460
        %462 = vrot.lane.b32.xlu0 %v427, 8
        %v463 = vpop.permute.xlu0 %462
        %464 = vrot.lane.b32.xlu0 %v429, 8
        %v465 = vpop.permute.xlu0 %464
        %466 = vrot.lane.b32.xlu0 %v432, 8
        %v467 = vpop.permute.xlu0 %466
        %468 = vrot.lane.b32.xlu0 %v434, 8
        %v469 = vpop.permute.xlu0 %468
        %470 = vrot.lane.b32.xlu0 %v437, 8
        %v471 = vpop.permute.xlu0 %470
        %472 = vrot.lane.b32.xlu0 %v439, 8
        %v473 = vpop.permute.xlu0 %472
        %474 = vrot.lane.b32.xlu0 %v442, 8
        %v475 = vpop.permute.xlu0 %474
        %476 = vrot.lane.b32.xlu0 %v444, 8
        %v477 = vpop.permute.xlu0 %476
        %478 = vrot.lane.b32.xlu0 %v447, 8
        %v479 = vpop.permute.xlu0 %478
        %480 = vrot.lane.b32.xlu0 %v449, 8
        %v481 = vpop.permute.xlu0 %480
        %500 = vrot.lane.b32.xlu0 %v269, 12
        %v501 = vpop.permute.xlu0 %500
        %502 = vrot.lane.b32.xlu0 %v270, 12
        %v503 = vpop.permute.xlu0 %502
        %504 = vrot.lane.b32.xlu0 %v272, 12
        %v505 = vpop.permute.xlu0 %504
        %506 = vrot.lane.b32.xlu0 %v273, 12
        %v507 = vpop.permute.xlu0 %506
        %508 = vrot.lane.b32.xlu0 %v275, 12
        %v509 = vpop.permute.xlu0 %508
        %510 = vrot.lane.b32.xlu0 %v276, 12
        %v511 = vpop.permute.xlu0 %510
        %512 = vrot.lane.b32.xlu0 %v278, 12
        %v513 = vpop.permute.xlu0 %512
        %514 = vrot.lane.b32.xlu0 %v279, 12
        %v515 = vpop.permute.xlu0 %514
        %516 = vrot.lane.b32.xlu0 %v281, 12
        %v517 = vpop.permute.xlu0 %516
        %518 = vrot.lane.b32.xlu0 %v282, 12
        %v519 = vpop.permute.xlu0 %518
        %520 = vrot.lane.b32.xlu0 %v284, 12
        %v521 = vpop.permute.xlu0 %520
        %522 = vrot.lane.b32.xlu0 %v285, 12
        %v523 = vpop.permute.xlu0 %522
        %524 = vrot.lane.b32.xlu0 %v287, 12
        %v525 = vpop.permute.xlu0 %524
        %526 = vrot.lane.b32.xlu0 %v288, 12
        %v527 = vpop.permute.xlu0 %526
        %528 = vrot.lane.b32.xlu0 %v290, 12
        %v529 = vpop.permute.xlu0 %528
        %530 = vrot.lane.b32.xlu0 %v291, 12
        %v531 = vpop.permute.xlu0 %530
        %v549 = vrot.slane %v290, 1
        %v550 = vrot.slane %v291, 1
        %v551 = vsel %vm320, %v549, %v550
        %v552 = vrot.slane %v292, 1
        %v553 = vsel %vm320, %v550, %v552
        %554 = vrot.lane.b32.xlu0 %v328, 16
        %v555 = vpop.permute.xlu0 %554
        %556 = vrot.lane.b32.xlu0 %v330, 16
        %v557 = vpop.permute.xlu0 %556
        %558 = vrot.lane.b32.xlu0 %v333, 16
        %v559 = vpop.permute.xlu0 %558
        %560 = vrot.lane.b32.xlu0 %v335, 16
        %v561 = vpop.permute.xlu0 %560
        %562 = vrot.lane.b32.xlu0 %v338, 16
        %v563 = vpop.permute.xlu0 %562
        %564 = vrot.lane.b32.xlu0 %v340, 16
        %v565 = vpop.permute.xlu0 %564
        %566 = vrot.lane.b32.xlu0 %v343, 16
        %v567 = vpop.permute.xlu0 %566
        %568 = vrot.lane.b32.xlu0 %v345, 16
        %v569 = vpop.permute.xlu0 %568
        %570 = vrot.lane.b32.xlu0 %v348, 16
        %v571 = vpop.permute.xlu0 %570
        %572 = vrot.lane.b32.xlu0 %v350, 16
        %v573 = vpop.permute.xlu0 %572
        %574 = vrot.lane.b32.xlu0 %v353, 16
        %v575 = vpop.permute.xlu0 %574
        %576 = vrot.lane.b32.xlu0 %v355, 16
        %v577 = vpop.permute.xlu0 %576
        %578 = vrot.lane.b32.xlu0 %v358, 16
        %v579 = vpop.permute.xlu0 %578
        %580 = vrot.lane.b32.xlu0 %v360, 16
        %v581 = vpop.permute.xlu0 %580
        %582 = vrot.lane.b32.xlu0 %v551, 16
        %v583 = vpop.permute.xlu0 %582
        %584 = vrot.lane.b32.xlu0 %v553, 16
        %v585 = vpop.permute.xlu0 %584
        %v602 = vrot.slane %v290, 2
        %v603 = vrot.slane %v291, 2
        %v604 = vsel %vm409, %v602, %v603
        %v605 = vrot.slane %v292, 2
        %v606 = vsel %vm409, %v603, %v605
        %607 = vrot.lane.b32.xlu0 %v417, 20
        %v608 = vpop.permute.xlu0 %607
        %609 = vrot.lane.b32.xlu0 %v419, 20
        %v610 = vpop.permute.xlu0 %609
        %611 = vrot.lane.b32.xlu0 %v422, 20
        %v612 = vpop.permute.xlu0 %611
        %613 = vrot.lane.b32.xlu0 %v424, 20
        %v614 = vpop.permute.xlu0 %613
        %615 = vrot.lane.b32.xlu0 %v427, 20
        %v616 = vpop.permute.xlu0 %615
        %617 = vrot.lane.b32.xlu0 %v429, 20
        %v618 = vpop.permute.xlu0 %617
        %619 = vrot.lane.b32.xlu0 %v432, 20
        %v620 = vpop.permute.xlu0 %619
        %621 = vrot.lane.b32.xlu0 %v434, 20
        %v622 = vpop.permute.xlu0 %621
        %623 = vrot.lane.b32.xlu0 %v437, 20
        %v624 = vpop.permute.xlu0 %623
        %625 = vrot.lane.b32.xlu0 %v439, 20
        %v626 = vpop.permute.xlu0 %625
        %627 = vrot.lane.b32.xlu0 %v442, 20
        %v628 = vpop.permute.xlu0 %627
        %629 = vrot.lane.b32.xlu0 %v444, 20
        %v630 = vpop.permute.xlu0 %629
        %631 = vrot.lane.b32.xlu0 %v447, 20
        %v632 = vpop.permute.xlu0 %631
        %633 = vrot.lane.b32.xlu0 %v449, 20
        %v634 = vpop.permute.xlu0 %633
        %635 = vrot.lane.b32.xlu0 %v604, 20
        %v636 = vpop.permute.xlu0 %635
        %637 = vrot.lane.b32.xlu0 %v606, 20
        %v638 = vpop.permute.xlu0 %637
        %657 = vrot.lane.b32.xlu0 %v272, 24
        %v658 = vpop.permute.xlu0 %657
        %659 = vrot.lane.b32.xlu0 %v273, 24
        %v660 = vpop.permute.xlu0 %659
        %661 = vrot.lane.b32.xlu0 %v275, 24
        %v662 = vpop.permute.xlu0 %661
        %663 = vrot.lane.b32.xlu0 %v276, 24
        %v664 = vpop.permute.xlu0 %663
        %665 = vrot.lane.b32.xlu0 %v278, 24
        %v666 = vpop.permute.xlu0 %665
        %667 = vrot.lane.b32.xlu0 %v279, 24
        %v668 = vpop.permute.xlu0 %667
        %669 = vrot.lane.b32.xlu0 %v281, 24
        %v670 = vpop.permute.xlu0 %669
        %671 = vrot.lane.b32.xlu0 %v282, 24
        %v672 = vpop.permute.xlu0 %671
        %673 = vrot.lane.b32.xlu0 %v284, 24
        %v674 = vpop.permute.xlu0 %673
        %675 = vrot.lane.b32.xlu0 %v285, 24
        %v676 = vpop.permute.xlu0 %675
        %677 = vrot.lane.b32.xlu0 %v287, 24
        %v678 = vpop.permute.xlu0 %677
        %679 = vrot.lane.b32.xlu0 %v288, 24
        %v680 = vpop.permute.xlu0 %679
        %681 = vrot.lane.b32.xlu0 %v290, 24
        %v682 = vpop.permute.xlu0 %681
        %683 = vrot.lane.b32.xlu0 %v291, 24
        %v684 = vpop.permute.xlu0 %683
        %685 = vrot.lane.b32.xlu0 %v293, 24
        %v686 = vpop.permute.xlu0 %685
        %687 = vrot.lane.b32.xlu0 %v294, 24
        %v688 = vpop.permute.xlu0 %687
        %v706 = vrot.slane %v293, 1
        %v707 = vrot.slane %v294, 1
        %v708 = vsel %vm320, %v706, %v707
        %v709 = vrot.slane %v295, 1
        %v710 = vsel %vm320, %v707, %v709
        %711 = vrot.lane.b32.xlu0 %v333, 28
        %v712 = vpop.permute.xlu0 %711
        %713 = vrot.lane.b32.xlu0 %v335, 28
        %v714 = vpop.permute.xlu0 %713
        %715 = vrot.lane.b32.xlu0 %v338, 28
        %v716 = vpop.permute.xlu0 %715
        %717 = vrot.lane.b32.xlu0 %v340, 28
        %v718 = vpop.permute.xlu0 %717
        %719 = vrot.lane.b32.xlu0 %v343, 28
        %v720 = vpop.permute.xlu0 %719
        %721 = vrot.lane.b32.xlu0 %v345, 28
        %v722 = vpop.permute.xlu0 %721
        %723 = vrot.lane.b32.xlu0 %v348, 28
        %v724 = vpop.permute.xlu0 %723
        %725 = vrot.lane.b32.xlu0 %v350, 28
        %v726 = vpop.permute.xlu0 %725
        %727 = vrot.lane.b32.xlu0 %v353, 28
        %v728 = vpop.permute.xlu0 %727
        %729 = vrot.lane.b32.xlu0 %v355, 28
        %v730 = vpop.permute.xlu0 %729
        %731 = vrot.lane.b32.xlu0 %v358, 28
        %v732 = vpop.permute.xlu0 %731
        %733 = vrot.lane.b32.xlu0 %v360, 28
        %v734 = vpop.permute.xlu0 %733
        %735 = vrot.lane.b32.xlu0 %v551, 28
        %v736 = vpop.permute.xlu0 %735
        %737 = vrot.lane.b32.xlu0 %v553, 28
        %v738 = vpop.permute.xlu0 %737
        %739 = vrot.lane.b32.xlu0 %v708, 28
        %v740 = vpop.permute.xlu0 %739
        %741 = vrot.lane.b32.xlu0 %v710, 28
        %v742 = vpop.permute.xlu0 %741
        %v759 = vrot.slane %v293, 2
        %v760 = vrot.slane %v294, 2
        %v761 = vsel %vm409, %v759, %v760
        %v762 = vrot.slane %v295, 2
        %v763 = vsel %vm409, %v760, %v762
        %764 = vrot.lane.b32.xlu0 %v422, 32
        %v765 = vpop.permute.xlu0 %764
        %766 = vrot.lane.b32.xlu0 %v424, 32
        %v767 = vpop.permute.xlu0 %766
        %768 = vrot.lane.b32.xlu0 %v427, 32
        %v769 = vpop.permute.xlu0 %768
        %770 = vrot.lane.b32.xlu0 %v429, 32
        %v771 = vpop.permute.xlu0 %770
        %772 = vrot.lane.b32.xlu0 %v432, 32
        %v773 = vpop.permute.xlu0 %772
        %774 = vrot.lane.b32.xlu0 %v434, 32
        %v775 = vpop.permute.xlu0 %774
        %776 = vrot.lane.b32.xlu0 %v437, 32
        %v777 = vpop.permute.xlu0 %776
        %778 = vrot.lane.b32.xlu0 %v439, 32
        %v779 = vpop.permute.xlu0 %778
        %780 = vrot.lane.b32.xlu0 %v442, 32
        %v781 = vpop.permute.xlu0 %780
        %782 = vrot.lane.b32.xlu0 %v444, 32
        %v783 = vpop.permute.xlu0 %782
        %784 = vrot.lane.b32.xlu0 %v447, 32
        %v785 = vpop.permute.xlu0 %784
        %786 = vrot.lane.b32.xlu0 %v449, 32
        %v787 = vpop.permute.xlu0 %786
        %788 = vrot.lane.b32.xlu0 %v604, 32
        %v789 = vpop.permute.xlu0 %788
        %790 = vrot.lane.b32.xlu0 %v606, 32
        %v791 = vpop.permute.xlu0 %790
        %792 = vrot.lane.b32.xlu0 %v761, 32
        %v793 = vpop.permute.xlu0 %792
        %794 = vrot.lane.b32.xlu0 %v763, 32
        %v795 = vpop.permute.xlu0 %794
        %vm812 = vcmask 31744
        %v813 = vsel %vm812, %v266, %v362
        %v814 = vsel %vm812, %v267, %v364
        %v815 = vsel %vm812, %v269, %v366
        %v816 = vsel %vm812, %v270, %v368
        %v817 = vsel %vm812, %v272, %v370
        %v818 = vsel %vm812, %v273, %v372
        %v819 = vsel %vm812, %v275, %v374
        %v820 = vsel %vm812, %v276, %v376
        %v821 = vsel %vm812, %v278, %v378
        %v822 = vsel %vm812, %v279, %v380
        %v823 = vsel %vm812, %v281, %v382
        %v824 = vsel %vm812, %v282, %v384
        %v825 = vsel %vm812, %v284, %v386
        %v826 = vsel %vm812, %v285, %v388
        %v827 = vsel %vm812, %v287, %v390
        %v828 = vsel %vm812, %v288, %v392
        %vm829 = vcmask 64512
        %v830 = vsel %vm829, %v813, %v451
        %v831 = vsel %vm829, %v814, %v453
        %v832 = vsel %vm829, %v815, %v455
        %v833 = vsel %vm829, %v816, %v457
        %v834 = vsel %vm829, %v817, %v459
        %v835 = vsel %vm829, %v818, %v461
        %v836 = vsel %vm829, %v819, %v463
        %v837 = vsel %vm829, %v820, %v465
        %v838 = vsel %vm829, %v821, %v467
        %v839 = vsel %vm829, %v822, %v469
        %v840 = vsel %vm829, %v823, %v471
        %v841 = vsel %vm829, %v824, %v473
        %v842 = vsel %vm829, %v825, %v475
        %v843 = vsel %vm829, %v826, %v477
        %v844 = vsel %vm829, %v827, %v479
        %v845 = vsel %vm829, %v828, %v481
        %vm846 = vcmask 97280
        %v847 = vsel %vm846, %v830, %v501
        %v848 = vsel %vm846, %v831, %v503
        %v849 = vsel %vm846, %v832, %v505
        %v850 = vsel %vm846, %v833, %v507
        %v851 = vsel %vm846, %v834, %v509
        %v852 = vsel %vm846, %v835, %v511
        %v853 = vsel %vm846, %v836, %v513
        %v854 = vsel %vm846, %v837, %v515
        %v855 = vsel %vm846, %v838, %v517
        %v856 = vsel %vm846, %v839, %v519
        %v857 = vsel %vm846, %v840, %v521
        %v858 = vsel %vm846, %v841, %v523
        %v859 = vsel %vm846, %v842, %v525
        %v860 = vsel %vm846, %v843, %v527
        %v861 = vsel %vm846, %v844, %v529
        %v862 = vsel %vm846, %v845, %v531
        %vm863 = vcmask 130048
        %v864 = vsel %vm863, %v847, %v555
        %v865 = vsel %vm863, %v848, %v557
        %v866 = vsel %vm863, %v849, %v559
        %v867 = vsel %vm863, %v850, %v561
        %v868 = vsel %vm863, %v851, %v563
        %v869 = vsel %vm863, %v852, %v565
        %v870 = vsel %vm863, %v853, %v567
        %v871 = vsel %vm863, %v854, %v569
        %v872 = vsel %vm863, %v855, %v571
        %v873 = vsel %vm863, %v856, %v573
        %v874 = vsel %vm863, %v857, %v575
        %v875 = vsel %vm863, %v858, %v577
        %v876 = vsel %vm863, %v859, %v579
        %v877 = vsel %vm863, %v860, %v581
        %v878 = vsel %vm863, %v861, %v583
        %v879 = vsel %vm863, %v862, %v585
        %vm880 = vcmask 162816
        %v881 = vsel %vm880, %v864, %v608
        %v882 = vsel %vm880, %v865, %v610
        %v883 = vsel %vm880, %v866, %v612
        %v884 = vsel %vm880, %v867, %v614
        %v885 = vsel %vm880, %v868, %v616
        %v886 = vsel %vm880, %v869, %v618
        %v887 = vsel %vm880, %v870, %v620
        %v888 = vsel %vm880, %v871, %v622
        %v889 = vsel %vm880, %v872, %v624
        %v890 = vsel %vm880, %v873, %v626
        %v891 = vsel %vm880, %v874, %v628
        %v892 = vsel %vm880, %v875, %v630
        %v893 = vsel %vm880, %v876, %v632
        %v894 = vsel %vm880, %v877, %v634
        %v895 = vsel %vm880, %v878, %v636
        %v896 = vsel %vm880, %v879, %v638
        %vm897 = vcmask 195584
        %v898 = vsel %vm897, %v881, %v658
        %v899 = vsel %vm897, %v882, %v660
        %v900 = vsel %vm897, %v883, %v662
        %v901 = vsel %vm897, %v884, %v664
        %v902 = vsel %vm897, %v885, %v666
        %v903 = vsel %vm897, %v886, %v668
        %v904 = vsel %vm897, %v887, %v670
        %v905 = vsel %vm897, %v888, %v672
        %v906 = vsel %vm897, %v889, %v674
        %v907 = vsel %vm897, %v890, %v676
        %v908 = vsel %vm897, %v891, %v678
        %v909 = vsel %vm897, %v892, %v680
        %v910 = vsel %vm897, %v893, %v682
        %v911 = vsel %vm897, %v894, %v684
        %v912 = vsel %vm897, %v895, %v686
        %v913 = vsel %vm897, %v896, %v688
        %vm914 = vcmask 228352
        %v915 = vsel %vm914, %v898, %v712
        %v916 = vsel %vm914, %v899, %v714
        %v917 = vsel %vm914, %v900, %v716
        %v918 = vsel %vm914, %v901, %v718
        %v919 = vsel %vm914, %v902, %v720
        %v920 = vsel %vm914, %v903, %v722
        %v921 = vsel %vm914, %v904, %v724
        %v922 = vsel %vm914, %v905, %v726
        %v923 = vsel %vm914, %v906, %v728
        %v924 = vsel %vm914, %v907, %v730
        %v925 = vsel %vm914, %v908, %v732
        %v926 = vsel %vm914, %v909, %v734
        %v927 = vsel %vm914, %v910, %v736
        %v928 = vsel %vm914, %v911, %v738
        %v929 = vsel %vm914, %v912, %v740
        %v930 = vsel %vm914, %v913, %v742
        %vm931 = vcmask 261120
        %v932 = vsel %vm931, %v915, %v765
        %v933 = vsel %vm931, %v916, %v767
        %v934 = vsel %vm931, %v917, %v769
        %v935 = vsel %vm931, %v918, %v771
        %v936 = vsel %vm931, %v919, %v773
        %v937 = vsel %vm931, %v920, %v775
        %v938 = vsel %vm931, %v921, %v777
        %v939 = vsel %vm931, %v922, %v779
        %v940 = vsel %vm931, %v923, %v781
        %v941 = vsel %vm931, %v924, %v783
        %v942 = vsel %vm931, %v925, %v785
        %v943 = vsel %vm931, %v926, %v787
        %v944 = vsel %vm931, %v927, %v789
        %v945 = vsel %vm931, %v928, %v791
        %v946 = vsel %vm931, %v929, %v793
        %v947 = vsel %vm931, %v930, %v795
        %v948 = vpack.c.bf16 %v933, %v932
        %v949 = vpack.c.bf16 %v935, %v934
        %v950 = vpack.c.bf16 %v937, %v936
        %v951 = vpack.c.bf16 %v939, %v938
        %v952 = vpack.c.bf16 %v941, %v940
        %v953 = vpack.c.bf16 %v943, %v942
        %v954 = vpack.c.bf16 %v945, %v944
        %v955 = vpack.c.bf16 %v947, %v946
        %v956 = vld [vmem:[#allocation5] sm:$0xf]
        %v957 = vld [vmem:[#allocation5 + $0x4] sm:$0xf]
        %v958 = vld [vmem:[#allocation5 + $0x8] sm:$0xf]
        %v959 = vld [vmem:[#allocation5 + $0xc] sm:$0xf]
        %v960 = vld [vmem:[#allocation5 + $0x10] sm:$0x3]
        %v961 = vld [vmem:[#allocation7] sm:$0x1]
        %v963 = vlaneseq
        %v964 = vshrl.u32 %v963, 7
        %v965 = vsub.s32 0, %v964
        %v966 = vrot.slane %v961, %v965
        %v973 = vunpack.c.l.b16 %v956
        %v974 = vunpack.c.l.b16 %v957
        %v975 = vunpack.c.l.b16 %v958
        %v976 = vunpack.c.l.b16 %v959
        %v977 = vunpack.c.l.b16 %v960
        %v978 = vpack.c.b16 %v974, %v973
        %v979 = vpack.c.b16 %v976, %v975
        %v980 = vpack.c.b16 %v977, %v977
        %vm983 = vcmask 293888
        %v985 = vsel %vm983, %v948, 0
        %v988 = vsel %vm983, %v949, 0
        %v991 = vsel %vm983, %v950, 0
        %v994 = vsel %vm983, %v951, 0
        %v997 = vsel %vm983, %v952, 0
        %v1000 = vsel %vm983, %v953, 0
        %v1003 = vsel %vm983, %v954, 0
        %v1006 = vsel %vm983, %v955, 0
        %vm1008 = vcmask 1041408
        %v1010 = vsel %vm1008, %v980, 0
        %1012 = vmatprep.subr.bf16.mxu0 0
        %1013 = vmatpush1.bf16.msra.mxu0 %v978
        %1014 = vmatprep.subr.bf16.mxu0 0
        %1015 = vmatpush1.bf16.msra.mxu0 %v979
        %1016 = vmatprep.subr.bf16.mxu0 0
        %1017 = vmatpush1.bf16.msra.mxu0 %v1010
        %1018 = vmatprep.subr.bf16.mxu0 0
        %1019 = vmatpush1.bf16.msra.mxu0 0
        %1020 = vmatprep.subr.bf16.mxu0 0
        %1021 = vmatpush1.bf16.msra.mxu0 0
        %1022 = vmatprep.subr.bf16.mxu0 0
        %1023 = vmatpush1.bf16.msra.mxu0 0
        %1024 = vmatprep.subr.bf16.mxu0 0
        %1025 = vmatpush1.bf16.msra.mxu0 0
        %1026 = vmatprep.subr.bf16.mxu0 0
        %1027 = vmatpush1.bf16.msra.mxu0 0
        %1028 = vmatprep.subr.bf16.mxu0 0
        %1029 = vmatpush1.bf16.msra.mxu0 0
        %1030 = vmatprep.subr.bf16.mxu0 0
        %1031 = vmatpush1.bf16.msra.mxu0 0
        %1032 = vmatprep.subr.bf16.mxu0 0
        %1033 = vmatpush1.bf16.msra.mxu0 0
        %1034 = vmatprep.subr.bf16.mxu0 0
        %1035 = vmatpush1.bf16.msra.mxu0 0
        %1036 = vmatprep.subr.bf16.mxu0 0
        %1037 = vmatpush1.bf16.msra.mxu0 0
        %1038 = vmatprep.subr.bf16.mxu0 0
        %1039 = vmatpush1.bf16.msra.mxu0 0
        %1040 = vmatprep.subr.bf16.mxu0 0
        %1041 = vmatpush1.bf16.msra.mxu0 0
        %1042 = vmatprep.subr.bf16.mxu0 0
        %1043 = vmatpush1.bf16.msra.mxu0 0
        %1044 = vmatprep.mubr.bf16.mxu0 0
        %1045 = vmatmul.mubr.bf16.gmra.mrb[0].mxu0 %v985
        %v1046 = vpop.f32.mrb[0].mxu0
        %v1047 = vadd.f32 %v966, %v1046
        %v1048 = vpop.f32.mrb[0].mxu0
        %v1049 = vpop.f32.mrb[0].mxu0
        %v1050 = vadd.f32 %v966, %v1049
        %v1051 = vpop.f32.mrb[0].mxu0
        %1052 = vmatprep.mubr.bf16.mxu0 0
        %1053 = vmatmul.mubr.bf16.gmra.mrb[0].mxu0 %v988
        %v1054 = vpop.f32.mrb[0].mxu0
        %v1055 = vadd.f32 %v966, %v1054
        %v1056 = vpop.f32.mrb[0].mxu0
        %v1057 = vpop.f32.mrb[0].mxu0
        %v1058 = vadd.f32 %v966, %v1057
        %v1059 = vpop.f32.mrb[0].mxu0
        %1060 = vmatprep.mubr.bf16.mxu0 0
        %1061 = vmatmul.mubr.bf16.gmra.mrb[0].mxu0 %v991
        %v1062 = vpop.f32.mrb[0].mxu0
        %v1063 = vadd.f32 %v966, %v1062
        %v1064 = vpop.f32.mrb[0].mxu0
        %v1065 = vpop.f32.mrb[0].mxu0
        %v1066 = vadd.f32 %v966, %v1065
        %v1067 = vpop.f32.mrb[0].mxu0
        %1068 = vmatprep.mubr.bf16.mxu0 0
        %1069 = vmatmul.mubr.bf16.gmra.mrb[0].mxu0 %v994
        %v1070 = vpop.f32.mrb[0].mxu0
        %v1071 = vadd.f32 %v966, %v1070
        %v1072 = vpop.f32.mrb[0].mxu0
        %v1073 = vpop.f32.mrb[0].mxu0
        %v1074 = vadd.f32 %v966, %v1073
        %v1075 = vpop.f32.mrb[0].mxu0
        %1076 = vmatprep.mubr.bf16.mxu0 0
        %1077 = vmatmul.mubr.bf16.gmra.mrb[0].mxu0 %v997
        %v1078 = vpop.f32.mrb[0].mxu0
        %v1079 = vadd.f32 %v966, %v1078
        %v1080 = vpop.f32.mrb[0].mxu0
        %v1081 = vpop.f32.mrb[0].mxu0
        %v1082 = vadd.f32 %v966, %v1081
        %v1083 = vpop.f32.mrb[0].mxu0
        %1084 = vmatprep.mubr.bf16.mxu0 0
        %1085 = vmatmul.mubr.bf16.gmra.mrb[0].mxu0 %v1000
        %v1086 = vpop.f32.mrb[0].mxu0
        %v1087 = vadd.f32 %v966, %v1086
        %v1088 = vpop.f32.mrb[0].mxu0
        %v1089 = vpop.f32.mrb[0].mxu0
        %v1090 = vadd.f32 %v966, %v1089
        %v1091 = vpop.f32.mrb[0].mxu0
        %1092 = vmatprep.mubr.bf16.mxu0 0
        %1093 = vmatmul.mubr.bf16.gmra.mrb[0].mxu0 %v1003
        %v1094 = vpop.f32.mrb[0].mxu0
        %v1095 = vadd.f32 %v966, %v1094
        %v1096 = vpop.f32.mrb[0].mxu0
        %v1097 = vpop.f32.mrb[0].mxu0
        %v1098 = vadd.f32 %v966, %v1097
        %v1099 = vpop.f32.mrb[0].mxu0
        %1100 = vmatprep.mubr.bf16.mxu0 0
        %1101 = vmatmul.mubr.bf16.gmra.mrb[0].mxu0 %v1006
        %v1102 = vpop.f32.mrb[0].mxu0
        %v1103 = vadd.f32 %v966, %v1102
        %v1104 = vpop.f32.mrb[0].mxu0
        %v1105 = vpop.f32.mrb[0].mxu0
        %v1106 = vadd.f32 %v966, %v1105
        %v1107 = vpop.f32.mrb[0].mxu0
        %1108 = vdwg.mxu0
        %1109 = vst [vmem:[%s229] sm:$0xff] %v1047
        %1110 = vst [vmem:[%s229 + $0x8] sm:$0xff] %v1050
        %1111 = vst [vmem:[%s229 + $0x10] sm:$0xff] %v1055
        %1112 = vst [vmem:[%s229 + $0x18] sm:$0xff] %v1058
        %1113 = vst [vmem:[%s229 + $0x20] sm:$0xff] %v1063
        %1114 = vst [vmem:[%s229 + $0x28] sm:$0xff] %v1066
        %1115 = vst [vmem:[%s229 + $0x30] sm:$0xff] %v1071
        %1116 = vst [vmem:[%s229 + $0x38] sm:$0xff] %v1074
        %1117 = vst [vmem:[%s229 + $0x40] sm:$0xff] %v1079
        %1118 = vst [vmem:[%s229 + $0x48] sm:$0xff] %v1082
        %1119 = vst [vmem:[%s229 + $0x50] sm:$0xff] %v1087
        %1120 = vst [vmem:[%s229 + $0x58] sm:$0xff] %v1090
        %1121 = vst [vmem:[%s229 + $0x60] sm:$0xff] %v1095
        %1122 = vst [vmem:[%s229 + $0x68] sm:$0xff] %v1098
        %1123 = vst [vmem:[%s229 + $0x70] sm:$0xff] %v1103
        %1124 = vst [vmem:[%s229 + $0x78] sm:$0xff] %v1106
        %s1125 = sand.u32 %s111, 1
        %s1126 = scalar_lea.sflag [#allocation4], %s1125
        %s1127 = sand.u32 %s111, 1
        %s1128 = smul.addr %s1127, 128
        %s1129 = scalar_lea.vmem [#allocation8], %s1128
        // Predicated region
        $region45: #{tpu_custom_call.1} parent=31 // pred_check
          %p1130 = pneg %p121
        $region46: #{tpu_custom_call.1} parent=31 // pred_check_branch
          %1132 = sbr.rel (%p1130) target = $region48
        $region47: #{tpu_custom_call.1} parent=31 // pred_region
          %s1133 = smul.u32 16, %s26
          %s1135 = ssub.s32 2048, 2048
          %1136 = vsyncadd %s1126, %s1135
          %s1137 = smul.addr %s25, 32
          %s1138 = sadd.s32 %s1133, %s1137
          %s1139 = smul.addr %s1138, 128
          %s1140 = scalar_lea.hbm %s3, %s1139
          %s1141 = sshll.u32 %s1129, 4
          %s1142 = int_to_ptr.vmem [resolvable:$true] %s1141
          %1147 = dma.vmem_to_hbm [thread:$0]  %s1142, 2048, %s1140, %s1126, 128, 128, 8
        $region48: #{tpu_custom_call.1} parent=31 // pred_fallthru
          _
      $region32: #{tpu_custom_call.1} parent=5 // pred_fallthru
        _
      %p1148 = scmp.le.s32.totalorder 2, %s16
      // Predicated region
      $region49: #{tpu_custom_call.1} parent=5 // pred_check
        %p1149 = pneg %p1148
      $region50: #{tpu_custom_call.1} parent=5 // pred_check_branch
        %1151 = sbr.rel (%p1149) target = $region52
      $region51: #{tpu_custom_call.1} parent=5 // pred_region
        %s1152 = ssub.s32 %s16, 2
        // Predicated region
        $region53: #{tpu_custom_call.1} parent=51 // pred_check
          %p1153 = pneg %p127
        $region54: #{tpu_custom_call.1} parent=51 // pred_check_branch
          %1155 = sbr.rel (%p1153) target = $region56
        $region55: #{tpu_custom_call.1} parent=51 // pred_region
          %s1156 = sand.u32 %s112, 1
          %s1157 = scalar_lea.sflag [#allocation4], %s1156
          %s1158 = sand.u32 %s112, 1
          %s1159 = smul.addr %s1158, 128
          %s1160 = scalar_lea.vmem [#allocation8], %s1159
          %1161 = dma.done %s1157, 2048
        $region56: #{tpu_custom_call.1} parent=51 // pred_fallthru
          _
      $region52: #{tpu_custom_call.1} parent=5 // pred_fallthru
        _
    $region6: #{tpu_custom_call.1} parent=1 // loop_footer
      %s20 = sadd.s32 1, %s16
    $region7: #{tpu_custom_call.1} parent=1 // loop_footer_branch
      %15 = sbr.rel target = $region3
    $region8: #{tpu_custom_call.1} parent=1 // loop_exit
      _
    %1162 = vsyncpa [#allocation3], 1
    %s1163 = scalar_lea.sflag [#allocation3], 1
    %1164 = vsyncpa %s1163, 1
    %1165 = vsyncpa [#allocation6], 1
    %1166 = vsyncpa [#allocation4], 1
    %s1167 = scalar_lea.sflag [#allocation4], 1
    %1168 = vsyncpa %s1167, 1

</llo_original>
